<compile_context>
chip_gen: v5e
topology: v5e:2x2
jax: 0.10.0
libtpu: 0.0.40
codegen_flags: <defaults>
</compile_context>

<pallas_src>
import functools
import math

import jax
import jax.numpy as jnp
from jax.experimental import pallas as pl
from jax.experimental.pallas import tpu as pltpu


# ----------------------------------------------------------------------------
# Fused kernel: one (batch) element per grid step
# ----------------------------------------------------------------------------
def _mhca_kernel(x_ref, scale_ref, qp_ref, qw_ref, kw_ref, vw_ref, fcw_ref,
                 g_ref, b_ref, o_ref, *, H, D_k, D_v, temp, eps):
    x = x_ref[0]                                   # (L, D)
    scale = scale_ref[...]                         # (L, 1) cumulative value gate
    qp = qp_ref[...]                               # (n_token, D) learned query

    # --- fused projections (single pass over x) ---
    q = jnp.dot(qp, qw_ref[...], preferred_element_type=jnp.float32) * (1.0 / temp)
    k = jnp.dot(x, kw_ref[...], preferred_element_type=jnp.float32)
    v = jnp.dot(x * scale, vw_ref[...], preferred_element_type=jnp.float32)

    # --- per-head scaled-dot-product attention (heads = static lane slices) ---
    heads = []
    for h in range(H):
        qh = q[:, h * D_k:(h + 1) * D_k]           # (n_token, D_k)
        kh = k[:, h * D_k:(h + 1) * D_k]           # (L, D_k)
        vh = v[:, h * D_v:(h + 1) * D_v]           # (L, D_v)
        # contract on D_k directly -> MXU, no XLU transpose
        s = jax.lax.dot_general(qh, kh, (((1,), (1,)), ((), ())),
                                preferred_element_type=jnp.float32)   # (n_token, L)
        s = s - jnp.max(s, axis=-1, keepdims=True)
        p = jnp.exp(s)
        l = jnp.sum(p, axis=-1, keepdims=True)                        # (n_token, 1)
        oh = jnp.dot(p, vh, preferred_element_type=jnp.float32)       # (n_token, D_v)
        heads.append(oh * pl.reciprocal(l, approx=True))              # normalize after PV
    attn_out = jnp.concatenate(heads, axis=-1)                        # (n_token, H*D_v)

    # --- output projection + residual (learned query) + LayerNorm ---
    y = jnp.dot(attn_out, fcw_ref[...], preferred_element_type=jnp.float32)
    y = y + qp
    mean = jnp.mean(y, axis=-1, keepdims=True)
    c = y - mean
    var = jnp.mean(c * c, axis=-1, keepdims=True)
    inv = jax.lax.rsqrt(var + eps)
    o_ref[0] = (c * inv * g_ref[...] + b_ref[...]).astype(o_ref.dtype)


# ----------------------------------------------------------------------------
# Wrapper
# ----------------------------------------------------------------------------
def mhca_forward(x, params, *, n_token, H, D_k, D_v, S_gate=10, eps=1e-6):
    """x: (B, L, D) with L >= 3*S_gate (matches the PyTorch gate loop)."""
    B, L, D = x.shape
    temp = float(D_k) ** 0.5

    # Input-independent parameter preprocessing (hoisted out of the kernel):
    # cumulative gate applied to the first 3*S sequence positions of the value path.
    gates = jnp.cumprod(1.0 - jax.nn.sigmoid(params["gate_logit"]))   # (3*S_gate,)
    n_g = min(3 * S_gate, L)
    scale = jnp.ones((L,), x.dtype).at[:n_g].set(gates[:n_g].astype(x.dtype))
    scale = scale.reshape(L, 1)

    qp = params["q_param"].reshape(n_token, D)

    kernel = functools.partial(_mhca_kernel, H=H, D_k=D_k, D_v=D_v,
                               temp=temp, eps=eps)
    return pl.pallas_call(
        kernel,
        out_shape=jax.ShapeDtypeStruct((B, n_token, D), x.dtype),
        grid=(B,),
        in_specs=[
            pl.BlockSpec((1, L, D), lambda b: (b, 0, 0)),        # x (per batch)
            pl.BlockSpec((L, 1), lambda b: (0, 0)),              # value gate
            pl.BlockSpec((n_token, D), lambda b: (0, 0)),        # learned query (shared)
            pl.BlockSpec((D, H * D_k), lambda b: (0, 0)),        # q_w
            pl.BlockSpec((D, H * D_k), lambda b: (0, 0)),        # k_w
            pl.BlockSpec((D, H * D_v), lambda b: (0, 0)),        # v_w
            pl.BlockSpec((H * D_v, D), lambda b: (0, 0)),        # fc
            pl.BlockSpec((1, D), lambda b: (0, 0)),              # ln gamma
            pl.BlockSpec((1, D), lambda b: (0, 0)),              # ln beta
        ],
        out_specs=pl.BlockSpec((1, n_token, D), lambda b: (b, 0, 0)),
        compiler_params=pltpu.CompilerParams(
            dimension_semantics=("parallel",)),
    )(x, scale, qp, params["q_w"], params["k_w"], params["v_w"], params["fc"],
      params["ln_g"].reshape(1, D), params["ln_b"].reshape(1, D))


# ----------------------------------------------------------------------------
# Pure-JAX reference (eval semantics: dropout = identity)
# ----------------------------------------------------------------------------
def mhca_reference(x, params, *, n_token, H, D_k, D_v, S_gate=10, eps=1e-6):
    B, L, D = x.shape
    temp = float(D_k) ** 0.5
    qp = params["q_param"]                                            # (1, n_token, D)
    q = (qp.reshape(n_token, D) @ params["q_w"]).reshape(n_token, H, D_k)
    q = jnp.transpose(q, (1, 0, 2))                                   # (H, n_token, D_k)
    k = (x @ params["k_w"]).reshape(B, L, H, D_k).transpose(0, 2, 1, 3)
    gates = jnp.cumprod(1.0 - jax.nn.sigmoid(params["gate_logit"]))
    n_g = min(3 * S_gate, L)
    scale = jnp.ones((L,), x.dtype).at[:n_g].set(gates[:n_g].astype(x.dtype))
    x1 = x * scale[None, :, None]
    v = (x1 @ params["v_w"]).reshape(B, L, H, D_v).transpose(0, 2, 1, 3)
    attn = jnp.einsum('hqd,bhkd->bhqk', q / temp, k)
    attn = jax.nn.softmax(attn, axis=-1)
    o = jnp.einsum('bhqk,bhkd->bhqd', attn, v)
    o = o.transpose(0, 2, 1, 3).reshape(B, n_token, H * D_v)
    o = o @ params["fc"] + qp
    mean = o.mean(-1, keepdims=True)
    var = ((o - mean) ** 2).mean(-1, keepdims=True)
    return (o - mean) * jax.lax.rsqrt(var + eps) * params["ln_g"] + params["ln_b"]


# ----------------------------------------------------------------------------
# Deterministic parameter init (shapes match the PyTorch module __init__;
# linear weights stored transposed as (in_features, out_features))
# ----------------------------------------------------------------------------
def init_params(key, n_token, H, D, D_k, D_v, S_gate=10):
    ks = jax.random.split(key, 5)

    def lin(k, in_f, out_f):
        bound = 1.0 / math.sqrt(in_f)
        return jax.random.uniform(k, (in_f, out_f), jnp.float32, -bound, bound)

    q_bound = math.sqrt(1.0 / D_k)
    return dict(
        q_param=jax.random.uniform(ks[0], (1, n_token, D), jnp.float32,
                                   -q_bound, q_bound),
        q_w=lin(ks[1], D, H * D_k),
        k_w=lin(ks[2], D, H * D_k),
        v_w=lin(ks[3], D, H * D_v),
        fc=lin(ks[4], H * D_v, D),
        ln_g=jnp.ones((D,), jnp.float32),
        ln_b=jnp.zeros((D,), jnp.float32),
        gate_logit=-jnp.ones((3 * S_gate,), jnp.float32) * 10.0,
    )


# ----------------------------------------------------------------------------
if __name__ == "__main__":
    n_token, H, D, D_k, D_v = 8, 2, 32, 16, 16
    B, L = 2, 32          # L >= 3*S (=30) as required by the module's gate loop

    key = jax.random.PRNGKey(0)
    pkey, xkey = jax.random.split(key)
    params = init_params(pkey, n_token, H, D, D_k, D_v)
    x = jax.random.normal(xkey, (B, L, D), jnp.float32)

    fwd = jax.jit(functools.partial(mhca_forward, n_token=n_token, H=H,
                                    D_k=D_k, D_v=D_v))
    out = fwd(x, params)
    jax.block_until_ready(out)

    assert out.shape == (B, n_token, D), out.shape
    assert bool(jnp.all(jnp.isfinite(out)))

    ref = mhca_reference(x, params, n_token=n_token, H=H, D_k=D_k, D_v=D_v)
    max_err = float(jnp.max(jnp.abs(out - ref)))
    assert jnp.allclose(out, ref, atol=1e-2, rtol=1e-2), max_err

    print("KERNEL_OK")
</pallas_src>

<mosaic_0001>
module attributes {stable_mosaic.version = 11 : i64} {
  func.func @_mhca_kernel(%arg0: i32, %arg1: memref<1x32x32xf32, #tpu.memory_space<vmem>>, %arg2: memref<32x1xf32, #tpu.memory_space<vmem>>, %arg3: memref<8x32xf32, #tpu.memory_space<vmem>>, %arg4: memref<32x32xf32, #tpu.memory_space<vmem>>, %arg5: memref<32x32xf32, #tpu.memory_space<vmem>>, %arg6: memref<32x32xf32, #tpu.memory_space<vmem>>, %arg7: memref<32x32xf32, #tpu.memory_space<vmem>>, %arg8: memref<1x32xf32, #tpu.memory_space<vmem>>, %arg9: memref<1x32xf32, #tpu.memory_space<vmem>>, %arg10: memref<1x8x32xf32, #tpu.memory_space<vmem>>) attributes {dimension_semantics = [#tpu.dimension_semantics<parallel>], iteration_bounds = array<i64: 2>, scalar_prefetch = 0 : i64, scratch_operands = 0 : i64, tpu.core_type = #tpu.core_type<tc>, window_params = [{transform_indices = @transform_0, window_bounds = array<i64: 1, 32, 32>}, {pipeline_mode = #tpu.pipeline_mode<synchronous>, transform_indices = @transform_1, window_bounds = array<i64: 32, 1>}, {pipeline_mode = #tpu.pipeline_mode<synchronous>, transform_indices = @transform_2, window_bounds = array<i64: 8, 32>}, {pipeline_mode = #tpu.pipeline_mode<synchronous>, transform_indices = @transform_3, window_bounds = array<i64: 32, 32>}, {pipeline_mode = #tpu.pipeline_mode<synchronous>, transform_indices = @transform_4, window_bounds = array<i64: 32, 32>}, {pipeline_mode = #tpu.pipeline_mode<synchronous>, transform_indices = @transform_5, window_bounds = array<i64: 32, 32>}, {pipeline_mode = #tpu.pipeline_mode<synchronous>, transform_indices = @transform_6, window_bounds = array<i64: 32, 32>}, {pipeline_mode = #tpu.pipeline_mode<synchronous>, transform_indices = @transform_7, window_bounds = array<i64: 1, 32>}, {pipeline_mode = #tpu.pipeline_mode<synchronous>, transform_indices = @transform_8, window_bounds = array<i64: 1, 32>}, {transform_indices = @transform_9, window_bounds = array<i64: 1, 8, 32>}]} {
    %c0 = arith.constant 0 : index
    %c0_0 = arith.constant 0 : index
    %c0_1 = arith.constant 0 : index
    %0 = vector.load %arg1[%c0, %c0_0, %c0_1] : memref<1x32x32xf32, #tpu.memory_space<vmem>>, vector<1x32x32xf32>
    %1 = vector.shape_cast %0 : vector<1x32x32xf32> to vector<32x32xf32>
    %c0_2 = arith.constant 0 : index
    %c0_3 = arith.constant 0 : index
    %2 = vector.load %arg2[%c0_2, %c0_3] : memref<32x1xf32, #tpu.memory_space<vmem>>, vector<32x1xf32>
    %c0_4 = arith.constant 0 : index
    %c0_5 = arith.constant 0 : index
    %3 = vector.load %arg3[%c0_4, %c0_5] : memref<8x32xf32, #tpu.memory_space<vmem>>, vector<8x32xf32>
    %c0_6 = arith.constant 0 : index
    %c0_7 = arith.constant 0 : index
    %4 = vector.load %arg4[%c0_6, %c0_7] : memref<32x32xf32, #tpu.memory_space<vmem>>, vector<32x32xf32>
    %cst = arith.constant dense<0.000000e+00> : vector<8x32xf32>
    %5 = tpu.matmul %3, %4, %cst {dimension_numbers = #tpu.dot_dimension_numbers<[1], [0], [0], [1], [0, 0, 1, 1], [], []>} : vector<8x32xf32>, vector<32x32xf32>, vector<8x32xf32> -> vector<8x32xf32>
    %cst_8 = arith.constant 2.500000e-01 : f32
    %6 = vector.broadcast %cst_8 : f32 to vector<8x32xf32>
    %7 = arith.mulf %5, %6 : vector<8x32xf32>
    %c0_9 = arith.constant 0 : index
    %c0_10 = arith.constant 0 : index
    %8 = vector.load %arg5[%c0_9, %c0_10] : memref<32x32xf32, #tpu.memory_space<vmem>>, vector<32x32xf32>
    %cst_11 = arith.constant dense<0.000000e+00> : vector<32x32xf32>
    %9 = tpu.matmul %1, %8, %cst_11 {dimension_numbers = #tpu.dot_dimension_numbers<[1], [0], [0], [1], [0, 0, 1, 1], [], []>} : vector<32x32xf32>, vector<32x32xf32>, vector<32x32xf32> -> vector<32x32xf32>
    %10 = vector.broadcast %2 : vector<32x1xf32> to vector<32x32xf32>
    %11 = arith.mulf %1, %10 : vector<32x32xf32>
    %c0_12 = arith.constant 0 : index
    %c0_13 = arith.constant 0 : index
    %12 = vector.load %arg6[%c0_12, %c0_13] : memref<32x32xf32, #tpu.memory_space<vmem>>, vector<32x32xf32>
    %cst_14 = arith.constant dense<0.000000e+00> : vector<32x32xf32>
    %13 = tpu.matmul %11, %12, %cst_14 {dimension_numbers = #tpu.dot_dimension_numbers<[1], [0], [0], [1], [0, 0, 1, 1], [], []>} : vector<32x32xf32>, vector<32x32xf32>, vector<32x32xf32> -> vector<32x32xf32>
    %14 = vector.extract_strided_slice %7 {offsets = [0, 0], sizes = [8, 16], strides = [1, 1]} : vector<8x32xf32> to vector<8x16xf32>
    %15 = vector.extract_strided_slice %9 {offsets = [0, 0], sizes = [32, 16], strides = [1, 1]} : vector<32x32xf32> to vector<32x16xf32>
    %16 = vector.extract_strided_slice %13 {offsets = [0, 0], sizes = [32, 16], strides = [1, 1]} : vector<32x32xf32> to vector<32x16xf32>
    %cst_15 = arith.constant dense<0.000000e+00> : vector<8x32xf32>
    %17 = tpu.matmul %14, %15, %cst_15 {dimension_numbers = #tpu.dot_dimension_numbers<[1], [1], [0], [0], [0, 0, 1, 0], [], []>} : vector<8x16xf32>, vector<32x16xf32>, vector<8x32xf32> -> vector<8x32xf32>
    %cst_16 = arith.constant dense<0xFF800000> : vector<8xf32>
    %18 = vector.multi_reduction <maximumf>, %17, %cst_16 [1] : vector<8x32xf32> to vector<8xf32>
    %19 = vector.shape_cast %18 : vector<8xf32> to vector<8x1xf32>
    %20 = vector.broadcast %19 : vector<8x1xf32> to vector<8x32xf32>
    %21 = arith.subf %17, %20 : vector<8x32xf32>
    %22 = math.exp %21 : vector<8x32xf32>
    %cst_17 = arith.constant dense<0.000000e+00> : vector<8xf32>
    %23 = vector.multi_reduction <add>, %22, %cst_17 [1] : vector<8x32xf32> to vector<8xf32>
    %24 = vector.shape_cast %23 : vector<8xf32> to vector<8x1xf32>
    %cst_18 = arith.constant dense<0.000000e+00> : vector<8x16xf32>
    %25 = tpu.matmul %22, %16, %cst_18 {dimension_numbers = #tpu.dot_dimension_numbers<[1], [0], [0], [1], [0, 0, 1, 1], [], []>} : vector<8x32xf32>, vector<32x16xf32>, vector<8x16xf32> -> vector<8x16xf32>
    %26 = tpu.reciprocal %24 {approx = true} : vector<8x1xf32> -> vector<8x1xf32>
    %27 = vector.broadcast %26 : vector<8x1xf32> to vector<8x16xf32>
    %28 = arith.mulf %25, %27 : vector<8x16xf32>
    %29 = vector.extract_strided_slice %7 {offsets = [0, 16], sizes = [8, 16], strides = [1, 1]} : vector<8x32xf32> to vector<8x16xf32>
    %30 = vector.extract_strided_slice %9 {offsets = [0, 16], sizes = [32, 16], strides = [1, 1]} : vector<32x32xf32> to vector<32x16xf32>
    %31 = vector.extract_strided_slice %13 {offsets = [0, 16], sizes = [32, 16], strides = [1, 1]} : vector<32x32xf32> to vector<32x16xf32>
    %cst_19 = arith.constant dense<0.000000e+00> : vector<8x32xf32>
    %32 = tpu.matmul %29, %30, %cst_19 {dimension_numbers = #tpu.dot_dimension_numbers<[1], [1], [0], [0], [0, 0, 1, 0], [], []>} : vector<8x16xf32>, vector<32x16xf32>, vector<8x32xf32> -> vector<8x32xf32>
    %cst_20 = arith.constant dense<0xFF800000> : vector<8xf32>
    %33 = vector.multi_reduction <maximumf>, %32, %cst_20 [1] : vector<8x32xf32> to vector<8xf32>
    %34 = vector.shape_cast %33 : vector<8xf32> to vector<8x1xf32>
    %35 = vector.broadcast %34 : vector<8x1xf32> to vector<8x32xf32>
    %36 = arith.subf %32, %35 : vector<8x32xf32>
    %37 = math.exp %36 : vector<8x32xf32>
    %cst_21 = arith.constant dense<0.000000e+00> : vector<8xf32>
    %38 = vector.multi_reduction <add>, %37, %cst_21 [1] : vector<8x32xf32> to vector<8xf32>
    %39 = vector.shape_cast %38 : vector<8xf32> to vector<8x1xf32>
    %cst_22 = arith.constant dense<0.000000e+00> : vector<8x16xf32>
    %40 = tpu.matmul %37, %31, %cst_22 {dimension_numbers = #tpu.dot_dimension_numbers<[1], [0], [0], [1], [0, 0, 1, 1], [], []>} : vector<8x32xf32>, vector<32x16xf32>, vector<8x16xf32> -> vector<8x16xf32>
    %41 = tpu.reciprocal %39 {approx = true} : vector<8x1xf32> -> vector<8x1xf32>
    %42 = vector.broadcast %41 : vector<8x1xf32> to vector<8x16xf32>
    %43 = arith.mulf %40, %42 : vector<8x16xf32>
    %44 = tpu.concatenate %28, %43 in 1 : vector<8x16xf32>, vector<8x16xf32> -> vector<8x32xf32>
    %c0_23 = arith.constant 0 : index
    %c0_24 = arith.constant 0 : index
    %45 = vector.load %arg7[%c0_23, %c0_24] : memref<32x32xf32, #tpu.memory_space<vmem>>, vector<32x32xf32>
    %cst_25 = arith.constant dense<0.000000e+00> : vector<8x32xf32>
    %46 = tpu.matmul %44, %45, %cst_25 {dimension_numbers = #tpu.dot_dimension_numbers<[1], [0], [0], [1], [0, 0, 1, 1], [], []>} : vector<8x32xf32>, vector<32x32xf32>, vector<8x32xf32> -> vector<8x32xf32>
    %47 = arith.addf %46, %3 : vector<8x32xf32>
    %cst_26 = arith.constant dense<0.000000e+00> : vector<8xf32>
    %48 = vector.multi_reduction <add>, %47, %cst_26 [1] : vector<8x32xf32> to vector<8xf32>
    %49 = vector.shape_cast %48 : vector<8xf32> to vector<8x1xf32>
    %cst_27 = arith.constant 3.200000e+01 : f32
    %50 = vector.broadcast %cst_27 : f32 to vector<8x1xf32>
    %51 = arith.divf %49, %50 : vector<8x1xf32>
    %52 = vector.broadcast %51 : vector<8x1xf32> to vector<8x32xf32>
    %53 = arith.subf %47, %52 : vector<8x32xf32>
    %54 = arith.mulf %53, %53 : vector<8x32xf32>
    %cst_28 = arith.constant dense<0.000000e+00> : vector<8xf32>
    %55 = vector.multi_reduction <add>, %54, %cst_28 [1] : vector<8x32xf32> to vector<8xf32>
    %56 = vector.shape_cast %55 : vector<8xf32> to vector<8x1xf32>
    %cst_29 = arith.constant 3.200000e+01 : f32
    %57 = vector.broadcast %cst_29 : f32 to vector<8x1xf32>
    %58 = arith.divf %56, %57 : vector<8x1xf32>
    %cst_30 = arith.constant 9.99999997E-7 : f32
    %59 = vector.broadcast %cst_30 : f32 to vector<8x1xf32>
    %60 = arith.addf %58, %59 : vector<8x1xf32>
    %61 = math.rsqrt %60 : vector<8x1xf32>
    %62 = vector.broadcast %61 : vector<8x1xf32> to vector<8x32xf32>
    %63 = arith.mulf %53, %62 : vector<8x32xf32>
    %c0_31 = arith.constant 0 : index
    %c0_32 = arith.constant 0 : index
    %64 = vector.load %arg8[%c0_31, %c0_32] : memref<1x32xf32, #tpu.memory_space<vmem>>, vector<1x32xf32>
    %65 = vector.broadcast %64 : vector<1x32xf32> to vector<8x32xf32>
    %66 = arith.mulf %63, %65 : vector<8x32xf32>
    %c0_33 = arith.constant 0 : index
    %c0_34 = arith.constant 0 : index
    %67 = vector.load %arg9[%c0_33, %c0_34] : memref<1x32xf32, #tpu.memory_space<vmem>>, vector<1x32xf32>
    %68 = vector.broadcast %67 : vector<1x32xf32> to vector<8x32xf32>
    %69 = arith.addf %66, %68 : vector<8x32xf32>
    %c0_35 = arith.constant 0 : index
    %c0_36 = arith.constant 0 : index
    %c0_37 = arith.constant 0 : index
    %70 = vector.load %arg10[%c0_35, %c0_36, %c0_37] : memref<1x8x32xf32, #tpu.memory_space<vmem>>, vector<1x8x32xf32>
    %71 = vector.shape_cast %70 : vector<1x8x32xf32> to vector<8x32xf32>
    %72 = vector.shape_cast %69 : vector<8x32xf32> to vector<1x8x32xf32>
    tpu.vector_store %arg10[%c0_35, %c0_36, %c0_37], %72 {strides = array<i32>} : memref<1x8x32xf32, #tpu.memory_space<vmem>>, vector<1x8x32xf32>,
    return
  }
  func.func @transform_0(%arg0: i32) -> (i32, i32, i32) {
    %c0_i32 = arith.constant 0 : i32
    %c0_i32_0 = arith.constant 0 : i32
    %c0_i32_1 = arith.constant 0 : i32
    return %arg0, %c0_i32, %c0_i32_0 : i32, i32, i32
  }
  func.func @transform_1(%arg0: i32) -> (i32, i32) {
    %c0_i32 = arith.constant 0 : i32
    %c0_i32_0 = arith.constant 0 : i32
    %c0_i32_1 = arith.constant 0 : i32
    return %c0_i32, %c0_i32_0 : i32, i32
  }
  func.func @transform_2(%arg0: i32) -> (i32, i32) {
    %c0_i32 = arith.constant 0 : i32
    %c0_i32_0 = arith.constant 0 : i32
    %c0_i32_1 = arith.constant 0 : i32
    return %c0_i32, %c0_i32_0 : i32, i32
  }
  func.func @transform_3(%arg0: i32) -> (i32, i32) {
    %c0_i32 = arith.constant 0 : i32
    %c0_i32_0 = arith.constant 0 : i32
    %c0_i32_1 = arith.constant 0 : i32
    return %c0_i32, %c0_i32_0 : i32, i32
  }
  func.func @transform_4(%arg0: i32) -> (i32, i32) {
    %c0_i32 = arith.constant 0 : i32
    %c0_i32_0 = arith.constant 0 : i32
    %c0_i32_1 = arith.constant 0 : i32
    return %c0_i32, %c0_i32_0 : i32, i32
  }
  func.func @transform_5(%arg0: i32) -> (i32, i32) {
    %c0_i32 = arith.constant 0 : i32
    %c0_i32_0 = arith.constant 0 : i32
    %c0_i32_1 = arith.constant 0 : i32
    return %c0_i32, %c0_i32_0 : i32, i32
  }
  func.func @transform_6(%arg0: i32) -> (i32, i32) {
    %c0_i32 = arith.constant 0 : i32
    %c0_i32_0 = arith.constant 0 : i32
    %c0_i32_1 = arith.constant 0 : i32
    return %c0_i32, %c0_i32_0 : i32, i32
  }
  func.func @transform_7(%arg0: i32) -> (i32, i32) {
    %c0_i32 = arith.constant 0 : i32
    %c0_i32_0 = arith.constant 0 : i32
    %c0_i32_1 = arith.constant 0 : i32
    return %c0_i32, %c0_i32_0 : i32, i32
  }
  func.func @transform_8(%arg0: i32) -> (i32, i32) {
    %c0_i32 = arith.constant 0 : i32
    %c0_i32_0 = arith.constant 0 : i32
    %c0_i32_1 = arith.constant 0 : i32
    return %c0_i32, %c0_i32_0 : i32, i32
  }
  func.func @transform_9(%arg0: i32) -> (i32, i32, i32) {
    %c0_i32 = arith.constant 0 : i32
    %c0_i32_0 = arith.constant 0 : i32
    %c0_i32_1 = arith.constant 0 : i32
    return %arg0, %c0_i32, %c0_i32_0 : i32, i32, i32
  }
}

</mosaic_0001>

<llo_original>
// kernel: mhca_forward.1
$region0: #{mhca_forward.1}
  #allocation0 [shape = 'u32[]', space=smem, size = 0x4, offset = 0x4, fixed_abs, tag = 'smem constant byte address 0x4 - core index']
  #allocation1 [shape = 'u32[72,128]{1,0:T(1,128)}', space=vmem, size = 0x9000, scoped, tag = 'internal scratch']
  %s0 = inlined_call_operand.vmem [shape: f32[2,32,32], index: 0, kind: input, shape index: {}]
  %s1 = inlined_call_operand.vmem [shape: f32[32,1], index: 1, kind: input, shape index: {}]
  %s2 = inlined_call_operand.hbm [shape: f32[8,32], index: 2, kind: input, shape index: {}]
  %s3 = inlined_call_operand.vmem [shape: f32[32,32], index: 3, kind: input, shape index: {}]
  %s4 = inlined_call_operand.vmem [shape: f32[32,32], index: 4, kind: input, shape index: {}]
  %s5 = inlined_call_operand.vmem [shape: f32[32,32], index: 5, kind: input, shape index: {}]
  %s6 = inlined_call_operand.hbm [shape: f32[32,32], index: 6, kind: input, shape index: {}]
  %s7 = inlined_call_operand.vmem [shape: f32[1,32], index: 7, kind: input, shape index: {}]
  %s8 = inlined_call_operand.vmem [shape: f32[1,32], index: 8, kind: input, shape index: {}]
  %s9 = inlined_call_operand.hbm [shape: f32[2,8,32], index: 9, kind: output, shape index: {}]
  %s10 = sld [smem:[#allocation0]]
  $region77: #{mhca_forward.1} parent=0
    _
  %s12 = ssub.s32 1, %s10
  %s13 = scalar_select 0, %s12, %s10
  $region1: #{mhca_forward.1} parent=0
    #allocation2 [shape = 'u8[4096]{0}', space=vmem, size = 0x1000, scoped, tag = 'input window, operand 2, single buffered']
    #allocation3 [shape = 's32[2]{0}', space=sflag, size = 0x8, scoped, tag = 'scoped memory for mhca_forward.1']
    #allocation4 [shape = 's32[2]{0}', space=sflag, size = 0x8, scoped, tag = 'scoped memory for mhca_forward.1']
    #allocation5 [shape = 'u8[16384]{0}', space=vmem, size = 0x4000, scoped, tag = 'input window, operand 6, single buffered']
    #allocation6 [shape = 's32[1]{0}', space=sflag, size = 0x4, scoped, tag = 'scoped memory for mhca_forward.1']
    #allocation7 [shape = 'u8[8192]{0}', space=vmem, size = 0x2000, scoped, tag = 'output window, operand 0']
    %14 = vsyncpa [#allocation3], 0
    %15 = vsyncpa [#allocation6], 0
    %16 = vsyncpa [#allocation4], 0
    %s17 = scalar_lea.sflag [#allocation4], 1
    %18 = vsyncpa %s17, 0
    loop: start=0, step=1, limit=4
    $region2: #{mhca_forward.1} parent=1 // loop_pre_header
      _
    $region3: #{mhca_forward.1} parent=1 // loop_header
      %s20 = sphi 0, %s24
      %p21 = scmp.ge.s32.totalorder %s20, 4
      %s30 = sphi 0, %s32
      %s33 = sphi 0, %s30
      %s34 = sphi 0, %s33
      %s50 = sphi 0, %s34
      %s54 = sphi 0, %s54
      %s56 = sphi 0, %s54
      %s57 = sphi 0, %s56
      %s71 = sphi 0, %s57
      %s75 = sphi 0, %s75
      %s77 = sphi 0, %s75
      %s78 = sphi 0, %s77
      %s92 = sphi 0, %s78
      %s96 = sphi 0, %s96
      %s98 = sphi 0, %s96
      %s99 = sphi 0, %s98
      %s113 = sphi 0, %s99
      %s117 = sphi 0, %s117
      %s119 = sphi 0, %s117
      %s120 = sphi 0, %s119
      %s134 = sphi 0, %s120
      %s138 = sphi 0, %s138
      %s140 = sphi 0, %s138
      %s141 = sphi 0, %s140
      %s155 = sphi 0, %s141
      %s159 = sphi 0, %s159
      %s161 = sphi 0, %s159
      %s162 = sphi 0, %s161
      %s176 = sphi 0, %s162
      %s180 = sphi 0, %s180
      %s182 = sphi 0, %s180
      %s183 = sphi 0, %s182
      %s197 = sphi 0, %s183
      %s201 = sphi 0, %s201
      %s203 = sphi 0, %s201
      %s204 = sphi 0, %s203
      %s218 = sphi 0, %s204
      %s224 = sphi 0, %s226
      %s227 = sphi 0, %s224
      %s228 = sphi 0, %s227
      %s244 = sphi 0, %s228
    $region4: #{mhca_forward.1} parent=1 // loop_header_branch
      %23 = sbr.rel (%p21) target = $region8
    $region5: #{mhca_forward.1} parent=1 // loop_body
      %s25 = ssub.s32 %s20, 1
      %s26 = ssub.s32 %s20, 2
      %s27 = sadd.s32 %s20, 1
      %s28 = ssub.s32 %s20, %s27
      %p29 = scmp.eq.s32.totalorder %s28, 0
      %s31 = sadd.s32 %s30, 1
      %s32 = scalar_select %p29, %s30, %s31
      %p35 = pneg %p29
      %p36 = scmp.eq.s32.totalorder %s20, 1
      %p37 = por %p35, %p36
      %p38 = scmp.ne.s32.totalorder %s30, %s33
      %p39 = scmp.eq.s32.totalorder %s20, 0
      %p40 = por %p38, %p39
      %p41 = scmp.ne.s32.totalorder %s30, %s33
      %p42 = scmp.eq.s32.totalorder %s25, 1
      %p43 = por %p41, %p42
      %p44 = scmp.ne.s32.totalorder %s33, %s34
      %p45 = scmp.eq.s32.totalorder %s25, 0
      %p46 = por %p44, %p45
      %p47 = scmp.ne.s32.totalorder %s33, %s34
      %p48 = scmp.eq.s32.totalorder %s26, 1
      %p49 = por %p47, %p48
      %p51 = scmp.ne.s32.totalorder %s34, %s50
      %p52 = scmp.eq.s32.totalorder %s26, 0
      %p53 = por %p51, %p52
      %s55 = sadd.s32 %s54, 1
      %p58 = scmp.eq.s32.totalorder %s20, 1
      %p59 = scmp.ne.s32.totalorder %s54, %s56
      %p60 = scmp.eq.s32.totalorder %s20, 0
      %p61 = por %p59, %p60
      %p62 = scmp.ne.s32.totalorder %s54, %s56
      %p63 = scmp.eq.s32.totalorder %s25, 1
      %p64 = por %p62, %p63
      %p65 = scmp.ne.s32.totalorder %s56, %s57
      %p66 = scmp.eq.s32.totalorder %s25, 0
      %p67 = por %p65, %p66
      %p68 = scmp.ne.s32.totalorder %s56, %s57
      %p69 = scmp.eq.s32.totalorder %s26, 1
      %p70 = por %p68, %p69
      %p72 = scmp.ne.s32.totalorder %s57, %s71
      %p73 = scmp.eq.s32.totalorder %s26, 0
      %p74 = por %p72, %p73
      %s76 = sadd.s32 %s75, 1
      %p79 = scmp.eq.s32.totalorder %s20, 1
      %p80 = scmp.ne.s32.totalorder %s75, %s77
      %p81 = scmp.eq.s32.totalorder %s20, 0
      %p82 = por %p80, %p81
      %p83 = scmp.ne.s32.totalorder %s75, %s77
      %p84 = scmp.eq.s32.totalorder %s25, 1
      %p85 = por %p83, %p84
      %p86 = scmp.ne.s32.totalorder %s77, %s78
      %p87 = scmp.eq.s32.totalorder %s25, 0
      %p88 = por %p86, %p87
      %p89 = scmp.ne.s32.totalorder %s77, %s78
      %p90 = scmp.eq.s32.totalorder %s26, 1
      %p91 = por %p89, %p90
      %p93 = scmp.ne.s32.totalorder %s78, %s92
      %p94 = scmp.eq.s32.totalorder %s26, 0
      %p95 = por %p93, %p94
      %s97 = sadd.s32 %s96, 1
      %p100 = scmp.eq.s32.totalorder %s20, 1
      %p101 = scmp.ne.s32.totalorder %s96, %s98
      %p102 = scmp.eq.s32.totalorder %s20, 0
      %p103 = por %p101, %p102
      %p104 = scmp.ne.s32.totalorder %s96, %s98
      %p105 = scmp.eq.s32.totalorder %s25, 1
      %p106 = por %p104, %p105
      %p107 = scmp.ne.s32.totalorder %s98, %s99
      %p108 = scmp.eq.s32.totalorder %s25, 0
      %p109 = por %p107, %p108
      %p110 = scmp.ne.s32.totalorder %s98, %s99
      %p111 = scmp.eq.s32.totalorder %s26, 1
      %p112 = por %p110, %p111
      %p114 = scmp.ne.s32.totalorder %s99, %s113
      %p115 = scmp.eq.s32.totalorder %s26, 0
      %p116 = por %p114, %p115
      %s118 = sadd.s32 %s117, 1
      %p121 = scmp.eq.s32.totalorder %s20, 1
      %p122 = scmp.ne.s32.totalorder %s117, %s119
      %p123 = scmp.eq.s32.totalorder %s20, 0
      %p124 = por %p122, %p123
      %p125 = scmp.ne.s32.totalorder %s117, %s119
      %p126 = scmp.eq.s32.totalorder %s25, 1
      %p127 = por %p125, %p126
      %p128 = scmp.ne.s32.totalorder %s119, %s120
      %p129 = scmp.eq.s32.totalorder %s25, 0
      %p130 = por %p128, %p129
      %p131 = scmp.ne.s32.totalorder %s119, %s120
      %p132 = scmp.eq.s32.totalorder %s26, 1
      %p133 = por %p131, %p132
      %p135 = scmp.ne.s32.totalorder %s120, %s134
      %p136 = scmp.eq.s32.totalorder %s26, 0
      %p137 = por %p135, %p136
      %s139 = sadd.s32 %s138, 1
      %p142 = scmp.eq.s32.totalorder %s20, 1
      %p143 = scmp.ne.s32.totalorder %s138, %s140
      %p144 = scmp.eq.s32.totalorder %s20, 0
      %p145 = por %p143, %p144
      %p146 = scmp.ne.s32.totalorder %s138, %s140
      %p147 = scmp.eq.s32.totalorder %s25, 1
      %p148 = por %p146, %p147
      %p149 = scmp.ne.s32.totalorder %s140, %s141
      %p150 = scmp.eq.s32.totalorder %s25, 0
      %p151 = por %p149, %p150
      %p152 = scmp.ne.s32.totalorder %s140, %s141
      %p153 = scmp.eq.s32.totalorder %s26, 1
      %p154 = por %p152, %p153
      %p156 = scmp.ne.s32.totalorder %s141, %s155
      %p157 = scmp.eq.s32.totalorder %s26, 0
      %p158 = por %p156, %p157
      %s160 = sadd.s32 %s159, 1
      %p163 = scmp.eq.s32.totalorder %s20, 1
      %p164 = scmp.ne.s32.totalorder %s159, %s161
      %p165 = scmp.eq.s32.totalorder %s20, 0
      %p166 = por %p164, %p165
      %p167 = scmp.ne.s32.totalorder %s159, %s161
      %p168 = scmp.eq.s32.totalorder %s25, 1
      %p169 = por %p167, %p168
      %p170 = scmp.ne.s32.totalorder %s161, %s162
      %p171 = scmp.eq.s32.totalorder %s25, 0
      %p172 = por %p170, %p171
      %p173 = scmp.ne.s32.totalorder %s161, %s162
      %p174 = scmp.eq.s32.totalorder %s26, 1
      %p175 = por %p173, %p174
      %p177 = scmp.ne.s32.totalorder %s162, %s176
      %p178 = scmp.eq.s32.totalorder %s26, 0
      %p179 = por %p177, %p178
      %s181 = sadd.s32 %s180, 1
      %p184 = scmp.eq.s32.totalorder %s20, 1
      %p185 = scmp.ne.s32.totalorder %s180, %s182
      %p186 = scmp.eq.s32.totalorder %s20, 0
      %p187 = por %p185, %p186
      %p188 = scmp.ne.s32.totalorder %s180, %s182
      %p189 = scmp.eq.s32.totalorder %s25, 1
      %p190 = por %p188, %p189
      %p191 = scmp.ne.s32.totalorder %s182, %s183
      %p192 = scmp.eq.s32.totalorder %s25, 0
      %p193 = por %p191, %p192
      %p194 = scmp.ne.s32.totalorder %s182, %s183
      %p195 = scmp.eq.s32.totalorder %s26, 1
      %p196 = por %p194, %p195
      %p198 = scmp.ne.s32.totalorder %s183, %s197
      %p199 = scmp.eq.s32.totalorder %s26, 0
      %p200 = por %p198, %p199
      %s202 = sadd.s32 %s201, 1
      %p205 = scmp.eq.s32.totalorder %s20, 1
      %p206 = scmp.ne.s32.totalorder %s201, %s203
      %p207 = scmp.eq.s32.totalorder %s20, 0
      %p208 = por %p206, %p207
      %p209 = scmp.ne.s32.totalorder %s201, %s203
      %p210 = scmp.eq.s32.totalorder %s25, 1
      %p211 = por %p209, %p210
      %p212 = scmp.ne.s32.totalorder %s203, %s204
      %p213 = scmp.eq.s32.totalorder %s25, 0
      %p214 = por %p212, %p213
      %p215 = scmp.ne.s32.totalorder %s203, %s204
      %p216 = scmp.eq.s32.totalorder %s26, 1
      %p217 = por %p215, %p216
      %p219 = scmp.ne.s32.totalorder %s204, %s218
      %p220 = scmp.eq.s32.totalorder %s26, 0
      %p221 = por %p219, %p220
      %s222 = ssub.s32 %s20, %s27
      %p223 = scmp.eq.s32.totalorder %s222, 0
      %s225 = sadd.s32 %s224, 1
      %s226 = scalar_select %p223, %s224, %s225
      %p229 = pneg %p223
      %p230 = scmp.eq.s32.totalorder %s20, 1
      %p231 = por %p229, %p230
      %p232 = scmp.ne.s32.totalorder %s224, %s227
      %p233 = scmp.eq.s32.totalorder %s20, 0
      %p234 = por %p232, %p233
      %p235 = scmp.ne.s32.totalorder %s224, %s227
      %p236 = scmp.eq.s32.totalorder %s25, 1
      %p237 = por %p235, %p236
      %p238 = scmp.ne.s32.totalorder %s227, %s228
      %p239 = scmp.eq.s32.totalorder %s25, 0
      %p240 = por %p238, %p239
      %p241 = scmp.ne.s32.totalorder %s227, %s228
      %p242 = scmp.eq.s32.totalorder %s26, 1
      %p243 = por %p241, %p242
      %p245 = scmp.ne.s32.totalorder %s228, %s244
      %p246 = scmp.eq.s32.totalorder %s26, 0
      %p247 = por %p245, %p246
      %p248 = scmp.le.s32.totalorder 1, %s20
      %p249 = scmp.lt.s32.totalorder %s20, 3
      %p250 = pnand %p248, %p249
      %p251 = pneg %p250
      // Predicated region
      $region9: #{mhca_forward.1} parent=5 // pred_check
        _
      $region10: #{mhca_forward.1} parent=5 // pred_check_branch
        %253 = sbr.rel (%p250) target = $region12
      $region11: #{mhca_forward.1} parent=5 // pred_region
        %s254 = ssub.s32 %s20, 1
        // Predicated region
        $region13: #{mhca_forward.1} parent=11 // pred_check
          %p255 = pneg %p67
        $region14: #{mhca_forward.1} parent=11 // pred_check_branch
          %257 = sbr.rel (%p255) target = $region16
        $region15: #{mhca_forward.1} parent=11 // pred_region
          _
        $region16: #{mhca_forward.1} parent=11 // pred_fallthru
          _
        // Predicated region
        $region17: #{mhca_forward.1} parent=11 // pred_check
          %p258 = pneg %p88
        $region18: #{mhca_forward.1} parent=11 // pred_check_branch
          %260 = sbr.rel (%p258) target = $region20
        $region19: #{mhca_forward.1} parent=11 // pred_region
          %262 = vsyncadd [#allocation3], 0
          %s264 = sshll.u32 %s2, 4
          %s265 = int_to_ptr.hbm [resolvable:$true] %s264
          %s266 = sshll.u32 [#allocation2], 4
          %s267 = int_to_ptr.vmem [resolvable:$true] %s266
          %269 = dma.hbm_to_vmem [thread:$0]  %s265, 128, %s267, [#allocation3]
        $region20: #{mhca_forward.1} parent=11 // pred_fallthru
          _
        // Predicated region
        $region21: #{mhca_forward.1} parent=11 // pred_check
          %p270 = pneg %p109
        $region22: #{mhca_forward.1} parent=11 // pred_check_branch
          %272 = sbr.rel (%p270) target = $region24
        $region23: #{mhca_forward.1} parent=11 // pred_region
          _
        $region24: #{mhca_forward.1} parent=11 // pred_fallthru
          _
        // Predicated region
        $region25: #{mhca_forward.1} parent=11 // pred_check
          %p273 = pneg %p130
        $region26: #{mhca_forward.1} parent=11 // pred_check_branch
          %275 = sbr.rel (%p273) target = $region28
        $region27: #{mhca_forward.1} parent=11 // pred_region
          _
        $region28: #{mhca_forward.1} parent=11 // pred_fallthru
          _
        // Predicated region
        $region29: #{mhca_forward.1} parent=11 // pred_check
          %p276 = pneg %p151
        $region30: #{mhca_forward.1} parent=11 // pred_check_branch
          %278 = sbr.rel (%p276) target = $region32
        $region31: #{mhca_forward.1} parent=11 // pred_region
          _
        $region32: #{mhca_forward.1} parent=11 // pred_fallthru
          _
        // Predicated region
        $region33: #{mhca_forward.1} parent=11 // pred_check
          %p279 = pneg %p172
        $region34: #{mhca_forward.1} parent=11 // pred_check_branch
          %281 = sbr.rel (%p279) target = $region36
        $region35: #{mhca_forward.1} parent=11 // pred_region
          %283 = vsyncadd [#allocation6], 0
          %s284 = sshll.u32 %s6, 4
          %s285 = int_to_ptr.hbm [resolvable:$true] %s284
          %s286 = sshll.u32 [#allocation5], 4
          %s287 = int_to_ptr.vmem [resolvable:$true] %s286
          %292 = dma.hbm_to_vmem [thread:$0]  %s285, 512, %s287, [#allocation6], 128, 128, 8
        $region36: #{mhca_forward.1} parent=11 // pred_fallthru
          _
        // Predicated region
        $region37: #{mhca_forward.1} parent=11 // pred_check
          %p293 = pneg %p193
        $region38: #{mhca_forward.1} parent=11 // pred_check_branch
          %295 = sbr.rel (%p293) target = $region40
        $region39: #{mhca_forward.1} parent=11 // pred_region
          _
        $region40: #{mhca_forward.1} parent=11 // pred_fallthru
          _
        // Predicated region
        $region41: #{mhca_forward.1} parent=11 // pred_check
          %p296 = pneg %p214
        $region42: #{mhca_forward.1} parent=11 // pred_check_branch
          %298 = sbr.rel (%p296) target = $region44
        $region43: #{mhca_forward.1} parent=11 // pred_region
          _
        $region44: #{mhca_forward.1} parent=11 // pred_fallthru
          _
      $region12: #{mhca_forward.1} parent=5 // pred_fallthru
        _
      %p299 = scmp.lt.s32.totalorder %s20, 2
      // Predicated region
      $region45: #{mhca_forward.1} parent=5 // pred_check
        %p300 = pneg %p299
      $region46: #{mhca_forward.1} parent=5 // pred_check_branch
        %302 = sbr.rel (%p300) target = $region48
      $region47: #{mhca_forward.1} parent=5 // pred_region
        // Predicated region
        $region49: #{mhca_forward.1} parent=47 // pred_check
          %p303 = pneg %p40
        $region50: #{mhca_forward.1} parent=47 // pred_check_branch
          %305 = sbr.rel (%p303) target = $region52
        $region51: #{mhca_forward.1} parent=47 // pred_region
          %p306 = scmp.lt.s32.totalorder %s20, 1
          %s307 = scalar_select %p306, %s20, 1
          %s308 = smul.addr %s307, 4
          %s309 = smul.addr %s308, 8
          %s310 = scalar_lea.vmem %s0, %s309
        $region52: #{mhca_forward.1} parent=47 // pred_fallthru
          _
      $region48: #{mhca_forward.1} parent=5 // pred_fallthru
        _
      %p311 = scmp.le.s32.totalorder 1, %s20
      %p312 = scmp.lt.s32.totalorder %s20, 3
      %p313 = pnand %p311, %p312
      %p314 = pneg %p313
      // Predicated region
      $region53: #{mhca_forward.1} parent=5 // pred_check
        _
      $region54: #{mhca_forward.1} parent=5 // pred_check_branch
        %316 = sbr.rel (%p313) target = $region56
      $region55: #{mhca_forward.1} parent=5 // pred_region
        %s317 = ssub.s32 %s20, 1
        // Predicated region
        $region57: #{mhca_forward.1} parent=55 // pred_check
          %p318 = pneg %p88
        $region58: #{mhca_forward.1} parent=55 // pred_check_branch
          %320 = sbr.rel (%p318) target = $region60
        $region59: #{mhca_forward.1} parent=55 // pred_region
          %322 = dma.done [#allocation3], 128
        $region60: #{mhca_forward.1} parent=55 // pred_fallthru
          _
        // Predicated region
        $region61: #{mhca_forward.1} parent=55 // pred_check
          %p323 = pneg %p172
        $region62: #{mhca_forward.1} parent=55 // pred_check_branch
          %325 = sbr.rel (%p323) target = $region64
        $region63: #{mhca_forward.1} parent=55 // pred_region
          %327 = dma.done [#allocation6], 512
        $region64: #{mhca_forward.1} parent=55 // pred_fallthru
          _
        %p328 = scmp.lt.s32.totalorder %s25, 1
        %s329 = scalar_select %p328, %s25, 1
        %s330 = smul.addr %s329, 4
        %s331 = smul.addr %s330, 8
        %s332 = scalar_lea.vmem %s0, %s331
        %p333 = pneg %p46
        %p334 = pneg %p43
        %p335 = pneg %p67
        %p336 = pneg %p64
        %p337 = pneg %p88
        %p338 = pneg %p85
        %p339 = pneg %p109
        %p340 = pneg %p106
        %p341 = pneg %p130
        %p342 = pneg %p127
        %p343 = pneg %p151
        %p344 = pneg %p148
        %p345 = pneg %p172
        %p346 = pneg %p169
        %p347 = pneg %p193
        %p348 = pneg %p190
        %p349 = pneg %p214
        %p350 = pneg %p211
        %p351 = pneg %p240
        %p352 = pneg %p237
        %s353 = sand.u32 %s227, 1
        %s354 = scalar_lea.sflag [#allocation4], %s353
        %s355 = sand.u32 %s227, 1
        %s356 = smul.addr %s355, 8
        %s357 = scalar_lea.vmem [#allocation7], %s356
        %p358 = scmp.lt.s32.totalorder %s25, 1
        %s359 = scalar_select %p358, %s25, 1
        %s360 = smul.addr %s359, 4
        %s361 = smul.addr %s360, 8
        %s362 = scalar_lea.vmem %s0, %s361
        %v363 = vld [vmem:[%s362] sm:$0xff]
        %v364 = vld [vmem:[%s362 + $0x8] sm:$0xff]
        %v365 = vld [vmem:[%s362 + $0x10] sm:$0xff]
        %v366 = vld [vmem:[%s362 + $0x18] sm:$0xff]
        %v367 = vld [vmem:[%s1] sm:$0xff]
        %v368 = vld [vmem:[%s1 + $0x8] sm:$0xff]
        %v369 = vld [vmem:[%s1 + $0x10] sm:$0xff]
        %v370 = vld [vmem:[%s1 + $0x18] sm:$0xff]
        %v371 = vld [vmem:[#allocation2] sm:$0xff]
        %v372 = vld [vmem:[%s3] sm:$0xff]
        %v373 = vld [vmem:[%s3 + $0x8] sm:$0xff]
        %v374 = vld [vmem:[%s3 + $0x10] sm:$0xff]
        %v375 = vld [vmem:[%s3 + $0x18] sm:$0xff]
        %vm376 = vcmask 261120
        %v378 = vsel %vm376, %v371, 0
        %380 = vmatpush.msra.mxu0 0.0
        %381 = vmatpush.msra.mxu0 0.0
        %382 = vmatpush.msra.mxu0 0.0
        %383 = vmatpush.msra.mxu0 0.0
        %384 = vmatpush.msra.mxu0 0.0
        %385 = vmatpush.msra.mxu0 0.0
        %386 = vmatpush.msra.mxu0 0.0
        %387 = vmatpush.msra.mxu0 0.0
        %388 = vmatpush.msra.mxu0 0.0
        %389 = vmatpush.msra.mxu0 0.0
        %390 = vmatpush.msra.mxu0 0.0
        %391 = vmatpush.msra.mxu0 0.0
        %392 = vmatpush.msra.mxu0 %v375
        %393 = vmatpush.msra.mxu0 %v374
        %394 = vmatpush.msra.mxu0 %v373
        %395 = vmatpush.msra.mxu0 %v372
        %396 = vmatmul.f32.gmra.mxu0 %v378
        %v397 = vpop.f32.mrf.mxu0
        %v398 = vadd.f32 0.0, %v397
        %399 = vdwg.mxu0
        %v400 = vmul.f32 %v398, 0.25
        %v401 = vld [vmem:[%s4] sm:$0xff]
        %v402 = vld [vmem:[%s4 + $0x8] sm:$0xff]
        %v403 = vld [vmem:[%s4 + $0x10] sm:$0xff]
        %v404 = vld [vmem:[%s4 + $0x18] sm:$0xff]
        %v406 = vsel %vm376, %v363, 0
        %v409 = vsel %vm376, %v364, 0
        %v412 = vsel %vm376, %v365, 0
        %v415 = vsel %vm376, %v366, 0
        %417 = vmatpush.msra.mxu0 0.0
        %418 = vmatpush.msra.mxu0 0.0
        %419 = vmatpush.msra.mxu0 0.0
        %420 = vmatpush.msra.mxu0 0.0
        %421 = vmatpush.msra.mxu0 0.0
        %422 = vmatpush.msra.mxu0 0.0
        %423 = vmatpush.msra.mxu0 0.0
        %424 = vmatpush.msra.mxu0 0.0
        %425 = vmatpush.msra.mxu0 0.0
        %426 = vmatpush.msra.mxu0 0.0
        %427 = vmatpush.msra.mxu0 0.0
        %428 = vmatpush.msra.mxu0 0.0
        %429 = vmatpush.msra.mxu0 %v404
        %430 = vmatpush.msra.mxu0 %v403
        %431 = vmatpush.msra.mxu0 %v402
        %432 = vmatpush.msra.mxu0 %v401
        %433 = vmatmul.f32.gmra.mxu0 %v406
        %v434 = vpop.f32.mrf.mxu0
        %v435 = vadd.f32 0.0, %v434
        %436 = vmatmul.f32.gmra.mxu0 %v409
        %v437 = vpop.f32.mrf.mxu0
        %v438 = vadd.f32 0.0, %v437
        %439 = vmatmul.f32.gmra.mxu0 %v412
        %v440 = vpop.f32.mrf.mxu0
        %v441 = vadd.f32 0.0, %v440
        %442 = vmatmul.f32.gmra.mxu0 %v415
        %v443 = vpop.f32.mrf.mxu0
        %v444 = vadd.f32 0.0, %v443
        %445 = vdwg.mxu0
        %447 = vset.pattern.permute.xlu0 0
        %448 = vperm.xlu0 %447, %v367
        %v449 = vpop.permute.xlu0 %448
        %452 = vset.pattern.permute.xlu0 0
        %453 = vperm.xlu0 %452, %v368
        %v454 = vpop.permute.xlu0 %453
        %457 = vset.pattern.permute.xlu0 0
        %458 = vperm.xlu0 %457, %v369
        %v459 = vpop.permute.xlu0 %458
        %462 = vset.pattern.permute.xlu0 0
        %463 = vperm.xlu0 %462, %v370
        %v464 = vpop.permute.xlu0 %463
        %v466 = vmul.f32 %v363, %v449
        %v467 = vmul.f32 %v364, %v454
        %v468 = vmul.f32 %v365, %v459
        %v469 = vmul.f32 %v366, %v464
        %v470 = vld [vmem:[%s5] sm:$0xff]
        %v471 = vld [vmem:[%s5 + $0x8] sm:$0xff]
        %v472 = vld [vmem:[%s5 + $0x10] sm:$0xff]
        %v473 = vld [vmem:[%s5 + $0x18] sm:$0xff]
        %v475 = vsel %vm376, %v466, 0
        %v478 = vsel %vm376, %v467, 0
        %v481 = vsel %vm376, %v468, 0
        %v484 = vsel %vm376, %v469, 0
        %486 = vmatpush.msra.mxu0 0.0
        %487 = vmatpush.msra.mxu0 0.0
        %488 = vmatpush.msra.mxu0 0.0
        %489 = vmatpush.msra.mxu0 0.0
        %490 = vmatpush.msra.mxu0 0.0
        %491 = vmatpush.msra.mxu0 0.0
        %492 = vmatpush.msra.mxu0 0.0
        %493 = vmatpush.msra.mxu0 0.0
        %494 = vmatpush.msra.mxu0 0.0
        %495 = vmatpush.msra.mxu0 0.0
        %496 = vmatpush.msra.mxu0 0.0
        %497 = vmatpush.msra.mxu0 0.0
        %498 = vmatpush.msra.mxu0 %v473
        %499 = vmatpush.msra.mxu0 %v472
        %500 = vmatpush.msra.mxu0 %v471
        %501 = vmatpush.msra.mxu0 %v470
        %502 = vmatmul.f32.gmra.mxu0 %v475
        %v503 = vpop.f32.mrf.mxu0
        %v504 = vadd.f32 0.0, %v503
        %505 = vmatmul.f32.gmra.mxu0 %v478
        %v506 = vpop.f32.mrf.mxu0
        %v507 = vadd.f32 0.0, %v506
        %508 = vmatmul.f32.gmra.mxu0 %v481
        %v509 = vpop.f32.mrf.mxu0
        %v510 = vadd.f32 0.0, %v509
        %511 = vmatmul.f32.gmra.mxu0 %v484
        %v512 = vpop.f32.mrf.mxu0
        %v513 = vadd.f32 0.0, %v512
        %514 = vdwg.mxu0
        %vm515 = vcmask 130048
        %v517 = vsel %vm515, %v400, 0
        %v520 = vsel %vm515, %v435, 0
        %v523 = vsel %vm515, %v438, 0
        %v526 = vsel %vm515, %v441, 0
        %v529 = vsel %vm515, %v444, 0
        %531 = vmatpush.xpose.msra.mxu0 0.0
        %532 = vmatpush.xpose.msra.mxu0 0.0
        %533 = vmatpush.xpose.msra.mxu0 0.0
        %534 = vmatpush.xpose.msra.mxu0 0.0
        %535 = vmatpush.xpose.msra.mxu0 0.0
        %536 = vmatpush.xpose.msra.mxu0 0.0
        %537 = vmatpush.xpose.msra.mxu0 0.0
        %538 = vmatpush.xpose.msra.mxu0 0.0
        %539 = vmatpush.xpose.msra.mxu0 0.0
        %540 = vmatpush.xpose.msra.mxu0 0.0
        %541 = vmatpush.xpose.msra.mxu0 0.0
        %542 = vmatpush.xpose.msra.mxu0 0.0
        %543 = vmatpush.xpose.msra.mxu0 %v529
        %544 = vmatpush.xpose.msra.mxu0 %v526
        %545 = vmatpush.xpose.msra.mxu0 %v523
        %546 = vmatpush.xpose.msra.mxu0 %v520
        %547 = vmatmul.f32.gmra.mxu0 %v517
        %v548 = vpop.f32.mrf.mxu0
        %v549 = vadd.f32 0.0, %v548
        %550 = vdwg.mxu0
        %v551 = vsel %vm376, %v549, -inf
        %552 = vmax.xlane.f32.xlu0 %v551
        %v553 = vpop.xlane.xlu0 %552
        %v554 = vsub.f32 %v549, %v553
        %v555 = vmul.f32 %v554, 1.442695
        %v556 = vpow.pop %v555
        %v557 = vsel %vm376, %v556, 0.0
        %558 = vadd.xlane.f32.xlu0 %v557
        %v559 = vpop.xlane.xlu0 %558
        %v561 = vsel %vm376, %v556, 0
        %563 = vmatpush.msra.mxu0 0.0
        %564 = vmatpush.msra.mxu0 0.0
        %565 = vmatpush.msra.mxu0 0.0
        %566 = vmatpush.msra.mxu0 0.0
        %567 = vmatpush.msra.mxu0 0.0
        %568 = vmatpush.msra.mxu0 0.0
        %569 = vmatpush.msra.mxu0 0.0
        %570 = vmatpush.msra.mxu0 0.0
        %571 = vmatpush.msra.mxu0 0.0
        %572 = vmatpush.msra.mxu0 0.0
        %573 = vmatpush.msra.mxu0 0.0
        %574 = vmatpush.msra.mxu0 0.0
        %575 = vmatpush.msra.mxu0 %v513
        %576 = vmatpush.msra.mxu0 %v510
        %577 = vmatpush.msra.mxu0 %v507
        %578 = vmatpush.msra.mxu0 %v504
        %579 = vmatmul.f32.gmra.mxu0 %v561
        %v580 = vpop.f32.mrf.mxu0
        %v581 = vadd.f32 0.0, %v580
        %582 = vdwg.mxu0
        %v583 = vrcp.pop %v559
        %v584 = vmul.f32 %v581, %v583
        %585 = vrot.lane.b32.xlu0 %v400, 112
        %v586 = vpop.permute.xlu0 %585
        %587 = vrot.lane.b32.xlu0 %v435, 112
        %v588 = vpop.permute.xlu0 %587
        %589 = vrot.lane.b32.xlu0 %v438, 112
        %v590 = vpop.permute.xlu0 %589
        %591 = vrot.lane.b32.xlu0 %v441, 112
        %v592 = vpop.permute.xlu0 %591
        %593 = vrot.lane.b32.xlu0 %v444, 112
        %v594 = vpop.permute.xlu0 %593
        %v595 = vsel %vm515, %v586, 0
        %v597 = vsel %vm515, %v588, 0
        %v599 = vsel %vm515, %v590, 0
        %v601 = vsel %vm515, %v592, 0
        %v603 = vsel %vm515, %v594, 0
        %605 = vmatpush.xpose.msra.mxu0 0.0
        %606 = vmatpush.xpose.msra.mxu0 0.0
        %607 = vmatpush.xpose.msra.mxu0 0.0
        %608 = vmatpush.xpose.msra.mxu0 0.0
        %609 = vmatpush.xpose.msra.mxu0 0.0
        %610 = vmatpush.xpose.msra.mxu0 0.0
        %611 = vmatpush.xpose.msra.mxu0 0.0
        %612 = vmatpush.xpose.msra.mxu0 0.0
        %613 = vmatpush.xpose.msra.mxu0 0.0
        %614 = vmatpush.xpose.msra.mxu0 0.0
        %615 = vmatpush.xpose.msra.mxu0 0.0
        %616 = vmatpush.xpose.msra.mxu0 0.0
        %617 = vmatpush.xpose.msra.mxu0 %v603
        %618 = vmatpush.xpose.msra.mxu0 %v601
        %619 = vmatpush.xpose.msra.mxu0 %v599
        %620 = vmatpush.xpose.msra.mxu0 %v597
        %621 = vmatmul.f32.gmra.mxu0 %v595
        %v622 = vpop.f32.mrf.mxu0
        %v623 = vadd.f32 0.0, %v622
        %624 = vdwg.mxu0
        %v625 = vsel %vm376, %v623, -inf
        %626 = vmax.xlane.f32.xlu0 %v625
        %v627 = vpop.xlane.xlu0 %626
        %v628 = vsub.f32 %v623, %v627
        %v629 = vmul.f32 %v628, 1.442695
        %v630 = vpow.pop %v629
        %v631 = vsel %vm376, %v630, 0.0
        %632 = vadd.xlane.f32.xlu0 %v631
        %v633 = vpop.xlane.xlu0 %632
        %638 = vrot.lane.b32.xlu0 %v504, 112
        %v639 = vpop.permute.xlu0 %638
        %640 = vrot.lane.b32.xlu0 %v507, 112
        %v641 = vpop.permute.xlu0 %640
        %642 = vrot.lane.b32.xlu0 %v510, 112
        %v643 = vpop.permute.xlu0 %642
        %644 = vrot.lane.b32.xlu0 %v513, 112
        %v645 = vpop.permute.xlu0 %644
        %v651 = vsel %vm376, %v630, 0
        %653 = vmatpush.msra.mxu0 0.0
        %654 = vmatpush.msra.mxu0 0.0
        %655 = vmatpush.msra.mxu0 0.0
        %656 = vmatpush.msra.mxu0 0.0
        %657 = vmatpush.msra.mxu0 0.0
        %658 = vmatpush.msra.mxu0 0.0
        %659 = vmatpush.msra.mxu0 0.0
        %660 = vmatpush.msra.mxu0 0.0
        %661 = vmatpush.msra.mxu0 0.0
        %662 = vmatpush.msra.mxu0 0.0
        %663 = vmatpush.msra.mxu0 0.0
        %664 = vmatpush.msra.mxu0 0.0
        %665 = vmatpush.msra.mxu0 %v645
        %666 = vmatpush.msra.mxu0 %v643
        %667 = vmatpush.msra.mxu0 %v641
        %668 = vmatpush.msra.mxu0 %v639
        %669 = vmatmul.f32.gmra.mxu0 %v651
        %v670 = vpop.f32.mrf.mxu0
        %v671 = vadd.f32 0.0, %v670
        %672 = vdwg.mxu0
        %v673 = vrcp.pop %v633
        %v674 = vmul.f32 %v671, %v673
        %676 = vrot.lane.b32.xlu0 %v674, 16
        %v677 = vpop.permute.xlu0 %676
        %v679 = vsel %vm515, %v584, %v677
        %v680 = vld [vmem:[#allocation5] sm:$0xff]
        %v681 = vld [vmem:[#allocation5 + $0x8] sm:$0xff]
        %v682 = vld [vmem:[#allocation5 + $0x10] sm:$0xff]
        %v683 = vld [vmem:[#allocation5 + $0x18] sm:$0xff]
        %v685 = vsel %vm376, %v679, 0
        %687 = vmatpush.msra.mxu0 0.0
        %688 = vmatpush.msra.mxu0 0.0
        %689 = vmatpush.msra.mxu0 0.0
        %690 = vmatpush.msra.mxu0 0.0
        %691 = vmatpush.msra.mxu0 0.0
        %692 = vmatpush.msra.mxu0 0.0
        %693 = vmatpush.msra.mxu0 0.0
        %694 = vmatpush.msra.mxu0 0.0
        %695 = vmatpush.msra.mxu0 0.0
        %696 = vmatpush.msra.mxu0 0.0
        %697 = vmatpush.msra.mxu0 0.0
        %698 = vmatpush.msra.mxu0 0.0
        %699 = vmatpush.msra.mxu0 %v683
        %700 = vmatpush.msra.mxu0 %v682
        %701 = vmatpush.msra.mxu0 %v681
        %702 = vmatpush.msra.mxu0 %v680
        %703 = vmatmul.f32.gmra.mxu0 %v685
        %v704 = vpop.f32.mrf.mxu0
        %v705 = vadd.f32 %v371, %v704
        %706 = vdwg.mxu0
        %v707 = vsel %vm376, %v705, 0.0
        %708 = vadd.xlane.f32.xlu0 %v707
        %v709 = vpop.xlane.xlu0 %708
        %v710 = vrcp.pop 32.0
        %v711 = vmul.f32 32.0, %v710
        %v712 = vsub.f32 1.0, %v711
        %v713 = vmul.f32 %v710, %v712
        %v714 = vadd.f32 %v710, %v713
        %vm715 = vweird.f32 %v710
        %v716 = vsel %vm715, %v710, %v714
        %v717 = vmul.f32 %v709, %v716
        %v718 = vsub.f32 %v705, %v717
        %v719 = vmul.f32 %v718, %v718
        %v720 = vsel %vm376, %v719, 0.0
        %721 = vadd.xlane.f32.xlu0 %v720
        %v722 = vpop.xlane.xlu0 %721
        %v723 = vmul.f32 %v722, %v716
        %v724 = vadd.f32 %v723, 1e-06
        %v725 = vrsqrt.pop %v724
        %v726 = vmul.f32 %v725, %v724
        %v727 = vmul.f32 %v726, %v725
        %v728 = vmul.f32 0.5, %v727
        %v729 = vsub.f32 1.5, %v728
        %v730 = vmul.f32 %v725, %v729
        %vm731 = vweird.f32 %v724
        %vm732 = vweird.f32 %v725
        %vm733 = vmor %vm731, %vm732
        %v734 = vsel %vm733, %v725, %v730
        %v735 = vmul.f32 %v718, %v734
        %v736 = vld [vmem:[%s7] sm:$0x1]
        %v738 = vperm.slane %v736, 0
        %v740 = vmul.f32 %v735, %v738
        %v741 = vld [vmem:[%s8] sm:$0x1]
        %v743 = vperm.slane %v741, 0
        %v745 = vadd.f32 %v740, %v743
        %746 = vst.msk [vmem:[%s357] sm:$0xff] %vm376, %v745
        %s747 = sand.u32 %s227, 1
        %s748 = scalar_lea.sflag [#allocation4], %s747
        %s749 = sand.u32 %s227, 1
        %s750 = smul.addr %s749, 8
        %s751 = scalar_lea.vmem [#allocation7], %s750
        // Predicated region
        $region65: #{mhca_forward.1} parent=55 // pred_check
          %p752 = pneg %p237
        $region66: #{mhca_forward.1} parent=55 // pred_check_branch
          %754 = sbr.rel (%p752) target = $region68
        $region67: #{mhca_forward.1} parent=55 // pred_region
          %756 = vsyncadd %s748, 0
          %s757 = smul.addr %s25, 8
          %s758 = scalar_lea.hbm %s9, %s757
          %s760 = sshll.u32 %s751, 4
          %s761 = int_to_ptr.vmem [resolvable:$true] %s760
          %s762 = sshll.u32 %s758, 4
          %s763 = int_to_ptr.hbm [resolvable:$true] %s762
          %765 = dma.vmem_to_hbm [thread:$0]  %s761, 128, %s763, %s748
        $region68: #{mhca_forward.1} parent=55 // pred_fallthru
          _
      $region56: #{mhca_forward.1} parent=5 // pred_fallthru
        _
      %p766 = scmp.le.s32.totalorder 2, %s20
      // Predicated region
      $region69: #{mhca_forward.1} parent=5 // pred_check
        %p767 = pneg %p766
      $region70: #{mhca_forward.1} parent=5 // pred_check_branch
        %769 = sbr.rel (%p767) target = $region72
      $region71: #{mhca_forward.1} parent=5 // pred_region
        %s770 = ssub.s32 %s20, 2
        // Predicated region
        $region73: #{mhca_forward.1} parent=71 // pred_check
          %p771 = pneg %p243
        $region74: #{mhca_forward.1} parent=71 // pred_check_branch
          %773 = sbr.rel (%p771) target = $region76
        $region75: #{mhca_forward.1} parent=71 // pred_region
          %s774 = sand.u32 %s228, 1
          %s775 = scalar_lea.sflag [#allocation4], %s774
          %s776 = sand.u32 %s228, 1
          %s777 = smul.addr %s776, 8
          %s778 = scalar_lea.vmem [#allocation7], %s777
          %780 = dma.done %s775, 128
        $region76: #{mhca_forward.1} parent=71 // pred_fallthru
          _
      $region72: #{mhca_forward.1} parent=5 // pred_fallthru
        _
    $region6: #{mhca_forward.1} parent=1 // loop_footer
      %s24 = sadd.s32 1, %s20
    $region7: #{mhca_forward.1} parent=1 // loop_footer_branch
      %19 = sbr.rel target = $region3
    $region8: #{mhca_forward.1} parent=1 // loop_exit
      _
    %781 = vsyncpa [#allocation3], 1
    %s782 = scalar_lea.sflag [#allocation3], 1
    %783 = vsyncpa %s782, 1
    %784 = vsyncpa [#allocation6], 1
    %785 = vsyncpa [#allocation4], 1
    %s786 = scalar_lea.sflag [#allocation4], 1
    %787 = vsyncpa %s786, 1

</llo_original>
